<compile_context>
chip_gen: v5e
topology: v5e:2x2
jax: 0.10.0
libtpu: 0.0.40
codegen_flags: <defaults>
</compile_context>

<pallas_src>
import functools

import numpy as np

import jax
import jax.numpy as jnp
from jax.experimental import pallas as pl
from jax.experimental.pallas import tpu as pltpu


_LANE_BITS = 7          # last dim of the in-kernel state view = 2**7 = 128 lanes
_ROLL_IS_NUMPY = None   # probed once: does pltpu.roll follow np.roll's convention?


# ----------------------------------------------------------------------------
# One-time probe of pltpu.roll's rotation direction (np.roll convention or its
# mirror), so the bit-flip select below is correct on any TPU generation.
# ----------------------------------------------------------------------------
def _probe_roll_convention():
    x = np.arange(8 * 128, dtype=np.float32).reshape(8, 128)

    def kernel(x_ref, o_ref):
        o_ref[...] = pltpu.roll(x_ref[...], 3, 1)

    out = pl.pallas_call(
        kernel, out_shape=jax.ShapeDtypeStruct((8, 128), jnp.float32)
    )(jnp.asarray(x))
    out = np.asarray(jax.block_until_ready(out))
    if np.array_equal(out, np.roll(x, 3, axis=1)):
        return True
    if np.array_equal(out, np.roll(x, -3, axis=1)):
        return False
    raise RuntimeError("unexpected pltpu.roll semantics")


def _roll_is_numpy():
    global _ROLL_IS_NUMPY
    if _ROLL_IS_NUMPY is None:
        _ROLL_IS_NUMPY = _probe_roll_convention()
    return _ROLL_IS_NUMPY


def _np_roll(x, shift, axis, size, is_numpy):
    """pltpu.roll with guaranteed np.roll semantics: out[i] = x[(i - shift) % size]."""
    s = shift % size
    if s == 0:
        return x
    if not is_numpy:
        s = size - s
    return pltpu.roll(x, s, axis)


# ----------------------------------------------------------------------------
# Kernel builder: one fully unrolled kernel applying every gate of the circuit
# to the VMEM-resident (R, 128) real/imag state slabs.
# ----------------------------------------------------------------------------
def _build_circuit_kernel(n, gate_qubits, roll_is_numpy):
    assert n >= _LANE_BITS + 3, "state view must be at least (8, 128)"
    R = 1 << (n - _LANE_BITS)
    C = 1 << _LANE_BITS

    def kernel(ur_ref, ui_ref, sr_ref, si_ref, or_ref, oi_ref):
        sr = sr_ref[...]
        si = si_ref[...]
        row_id = jax.lax.broadcasted_iota(jnp.int32, (R, C), 0)
        col_id = jax.lax.broadcasted_iota(jnp.int32, (R, C), 1)

        masks = {}  # bit-position -> boolean mask, built once, reused across gates

        def bit_of(p):   # boolean mask: bit p (0 = LSB) of the flat state index
            if p not in masks:
                if p < _LANE_BITS:
                    masks[p] = ((col_id >> p) & 1) == 1
                else:
                    masks[p] = ((row_id >> (p - _LANE_BITS)) & 1) == 1
            return masks[p]

        def flip(x, p):  # x evaluated at the flat index with bit p flipped
            if p < _LANE_BITS:
                axis, size, s = 1, C, 1 << p
            else:
                axis, size, s = 0, R, 1 << (p - _LANE_BITS)
            fwd = _np_roll(x, s, axis, size, roll_is_numpy)         # out[i] = x[i - s]
            bwd = _np_roll(x, size - s, axis, size, roll_is_numpy)  # out[i] = x[i + s]
            return jnp.where(bit_of(p), fwd, bwd)

        for g, (qa, qb) in enumerate(gate_qubits):
            pa = n - 1 - qa            # qubit 0 is the MSB of the flat index
            pb = n - 1 - qb
            a = bit_of(pa)
            b = bit_of(pb)
            base = 16 * g

            def coeff(entries, a=a, b=b, base=base):
                # entries: gate-matrix (row, col) for output bits (a,b)=00,01,10,11
                vr = [ur_ref[base + 4 * r + c] for (r, c) in entries]
                vi = [ui_ref[base + 4 * r + c] for (r, c) in entries]
                cr = jnp.where(a, jnp.where(b, vr[3], vr[2]),
                               jnp.where(b, vr[1], vr[0]))
                ci = jnp.where(a, jnp.where(b, vi[3], vi[2]),
                               jnp.where(b, vi[1], vi[0]))
                return cr, ci

            # out[i] = U[2a+b, 2a+b]       * s[i]
            #        + U[2a+b, 2(1-a)+b]   * s[i ^ bit_qa]
            #        + U[2a+b, 2a+(1-b)]   * s[i ^ bit_qb]
            #        + U[2a+b, 2(1-a)+1-b] * s[i ^ bit_qa ^ bit_qb]
            c0r, c0i = coeff(((0, 0), (1, 1), (2, 2), (3, 3)))
            c1r, c1i = coeff(((0, 2), (1, 3), (2, 0), (3, 1)))
            c2r, c2i = coeff(((0, 1), (1, 0), (2, 3), (3, 2)))
            c3r, c3i = coeff(((0, 3), (1, 2), (2, 1), (3, 0)))

            fa_r, fa_i = flip(sr, pa), flip(si, pa)
            fb_r, fb_i = flip(sr, pb), flip(si, pb)
            fab_r, fab_i = flip(fa_r, pb), flip(fa_i, pb)

            new_r = (c0r * sr - c0i * si) + (c1r * fa_r - c1i * fa_i) \
                  + (c2r * fb_r - c2i * fb_i) + (c3r * fab_r - c3i * fab_i)
            new_i = (c0r * si + c0i * sr) + (c1r * fa_i + c1i * fa_r) \
                  + (c2r * fb_i + c2i * fb_r) + (c3r * fab_i + c3i * fab_r)
            sr, si = new_r, new_i

        or_ref[...] = sr
        oi_ref[...] = si

    return kernel, R, C


# ----------------------------------------------------------------------------
# Parameter setup glue (outside the kernel, batched once over all gates).
# ----------------------------------------------------------------------------
def _cmatmul(ar, ai, br, bi):
    return (jnp.matmul(ar, br) - jnp.matmul(ai, bi),
            jnp.matmul(ar, bi) + jnp.matmul(ai, br))


def _expm_taylor(ar, ai, terms=12):
    # ||A|| ~ init_constant, so 12 terms are far below f32 epsilon already.
    eye = jnp.broadcast_to(jnp.eye(4, dtype=jnp.float32), ar.shape)
    res_r, res_i = eye, jnp.zeros_like(ar)
    t_r, t_i = eye, jnp.zeros_like(ar)
    for k in range(1, terms + 1):
        t_r, t_i = _cmatmul(t_r, t_i, ar, ai)
        t_r, t_i = t_r / k, t_i / k
        res_r = res_r + t_r
        res_i = res_i + t_i
    return res_r, res_i


# ----------------------------------------------------------------------------
# Full checkerboard forward (mirrors checkerboard.forward + _2local_U_block).
# ----------------------------------------------------------------------------
def checkerboard_forward(n, L, params, sr, si):
    G = n // 2
    gate_qubits = []
    hr_list, hi_list = [], []
    for i in range(L):
        for tag, offset in (("2local_1_%d" % i, 0), ("2local_2_%d" % i, 1)):
            hr, hi = params[tag]
            hr_list.append(hr)
            hi_list.append(hi)
            for g in range(G):
                gate_qubits.append(((2 * g + offset) % n, (2 * g + offset + 1) % n))

    # All unitaries U = expm(H - H^dagger), one batched Taylor series over every gate.
    hr_all = jnp.concatenate(hr_list, axis=0)
    hi_all = jnp.concatenate(hi_list, axis=0)
    ar = hr_all - jnp.swapaxes(hr_all, -1, -2)   # real(H - H^dag)
    ai = hi_all + jnp.swapaxes(hi_all, -1, -2)   # imag(H - H^dag)
    ur, ui = _expm_taylor(ar, ai)
    ur_flat = ur.reshape(-1)                     # (num_gates*16,) scalars -> SMEM
    ui_flat = ui.reshape(-1)

    kernel, R, C = _build_circuit_kernel(n, tuple(gate_qubits), _roll_is_numpy())
    sr2d = sr.reshape(R, C)
    si2d = si.reshape(R, C)

    out_r, out_i = pl.pallas_call(
        kernel,
        out_shape=[jax.ShapeDtypeStruct((R, C), jnp.float32)] * 2,
        in_specs=[
            pl.BlockSpec(memory_space=pltpu.MemorySpace.SMEM),   # gate coeffs (real)
            pl.BlockSpec(memory_space=pltpu.MemorySpace.SMEM),   # gate coeffs (imag)
            pl.BlockSpec(memory_space=pltpu.MemorySpace.VMEM),   # state real
            pl.BlockSpec(memory_space=pltpu.MemorySpace.VMEM),   # state imag
        ],
        out_specs=[
            pl.BlockSpec(memory_space=pltpu.MemorySpace.VMEM),
            pl.BlockSpec(memory_space=pltpu.MemorySpace.VMEM),
        ],
        input_output_aliases={2: 0, 3: 1},       # in-place state update
    )(ur_flat, ui_flat, sr2d, si2d)
    return out_r.reshape(-1), out_i.reshape(-1)


# ----------------------------------------------------------------------------
# Pure numpy (complex128) reference for correctness checking.
# ----------------------------------------------------------------------------
def numpy_reference(n, L, params_np, state_np):
    G = n // 2
    s = state_np.astype(np.complex128)
    for i in range(L):
        for key, offset in (("2local_1_%d" % i, 0), ("2local_2_%d" % i, 1)):
            H = params_np[key].astype(np.complex128)
            A = H - np.conj(np.transpose(H, (0, 2, 1)))
            U = np.zeros_like(A)
            for g in range(G):
                term = np.eye(4, dtype=np.complex128)
                acc = np.eye(4, dtype=np.complex128)
                for k in range(1, 25):
                    term = term @ A[g] / k
                    acc = acc + term
                U[g] = acc
            for g in range(G):
                qa = (2 * g + offset) % n
                qb = (2 * g + offset + 1) % n
                perm = (qa, qb) + tuple(q for q in range(n) if q not in (qa, qb))
                inv = np.argsort(perm)
                t = np.transpose(s.reshape((2,) * n), perm).reshape(4, -1)
                t = U[g] @ t
                s = np.transpose(t.reshape((2,) * n), inv).reshape(-1)
    return s


if __name__ == "__main__":
    n, L = 10, 2                 # 10 qubits -> 1024-dim state, 2 checkerboard layers
    init_constant = 1e-5
    G = n // 2
    D = 2 ** n

    _roll_is_numpy()             # probe pltpu.roll direction once, outside jit tracing

    key = jax.random.PRNGKey(0)

    # Deterministic parameter init: c * (randn + i*randn), shapes (n//2, 4, 4).
    params = {}
    params_np = {}
    for i in range(L):
        for tag in ("2local_1_%d" % i, "2local_2_%d" % i):
            key, k1, k2 = jax.random.split(key, 3)
            hr = init_constant * jax.random.normal(k1, (G, 4, 4), dtype=jnp.float32)
            hi = init_constant * jax.random.normal(k2, (G, 4, 4), dtype=jnp.float32)
            params[tag] = (hr, hi)
            params_np[tag] = np.asarray(hr) + 1j * np.asarray(hi)

    # Deterministic normalized input statevector.
    key, ks1, ks2 = jax.random.split(key, 3)
    sr0 = jax.random.normal(ks1, (D,), dtype=jnp.float32)
    si0 = jax.random.normal(ks2, (D,), dtype=jnp.float32)
    norm = jnp.sqrt(jnp.sum(sr0 ** 2 + si0 ** 2))
    sr0, si0 = sr0 / norm, si0 / norm

    fwd = jax.jit(functools.partial(checkerboard_forward, n, L))
    out_r, out_i = fwd(params, sr0, si0)
    jax.block_until_ready((out_r, out_i))

    out_c = np.asarray(out_r) + 1j * np.asarray(out_i)
    ref = numpy_reference(n, L, params_np, np.asarray(sr0) + 1j * np.asarray(si0))
    assert np.allclose(out_c, ref, atol=1e-4, rtol=1e-3), float(np.max(np.abs(out_c - ref)))

    print("KERNEL_OK")
</pallas_src>

<mosaic_0001>
module attributes {stable_mosaic.version = 11 : i64} {
  func.func @kernel(%arg0: memref<8x128xf32, #tpu.memory_space<vmem>>, %arg1: memref<8x128xf32, #tpu.memory_space<vmem>>) attributes {dimension_semantics = [], scalar_prefetch = 0 : i64, scratch_operands = 0 : i64, tpu.core_type = #tpu.core_type<tc>} {
    %c0 = arith.constant 0 : index
    %c0_0 = arith.constant 0 : index
    %0 = vector.load %arg0[%c0, %c0_0] : memref<8x128xf32, #tpu.memory_space<vmem>>, vector<8x128xf32>
    %c3_i32 = arith.constant 3 : i32
    %1 = tpu.dynamic_rotate %0 by %c3_i32 dim 1 : vector<8x128xf32>, i32 -> vector<8x128xf32>
    %c0_1 = arith.constant 0 : index
    %c0_2 = arith.constant 0 : index
    %2 = vector.load %arg1[%c0_1, %c0_2] : memref<8x128xf32, #tpu.memory_space<vmem>>, vector<8x128xf32>
    tpu.vector_store %arg1[%c0_1, %c0_2], %1 {strides = array<i32>} : memref<8x128xf32, #tpu.memory_space<vmem>>, vector<8x128xf32>,
    return
  }
}

</mosaic_0001>

<llo_original>
// kernel: tpu_custom_call.1
$region0: #{tpu_custom_call.1}
  #allocation0 [shape = 'u32[]', space=smem, size = 0x4, offset = 0x4, fixed_abs, tag = 'smem constant byte address 0x4 - core index']
  #allocation1 [shape = 'u32[72,128]{1,0:T(1,128)}', space=vmem, size = 0x9000, scoped, tag = 'internal scratch']
  %s0 = inlined_call_operand.hbm [shape: f32[8,128], index: 0, kind: input, shape index: {}]
  %s1 = inlined_call_operand.hbm [shape: f32[8,128], index: 1, kind: output, shape index: {}]
  %s2 = sld [smem:[#allocation0]]
  $region18: #{tpu_custom_call.1} parent=0
    _
  %s4 = ssub.s32 1, %s2
  %s5 = scalar_select 0, %s4, %s2
  $region1: #{tpu_custom_call.1} parent=0
    #allocation2 [shape = 'u8[4096]{0}', space=vmem, size = 0x1000, scoped, tag = 'input window, operand 0, single buffered']
    #allocation3 [shape = 's32[1]{0}', space=sflag, size = 0x4, scoped, tag = 'scoped memory for tpu_custom_call.1']
    #allocation4 [shape = 's32[1]{0}', space=sflag, size = 0x4, scoped, tag = 'scoped memory for tpu_custom_call.1']
    #allocation5 [shape = 'u8[4096]{0}', space=vmem, size = 0x1000, scoped, tag = 'output window, operand 0, single buffered']
    %6 = vsyncpa [#allocation3], 0
    %7 = vsyncpa [#allocation4], 0
    // Predicated region
    $region2: #{tpu_custom_call.1} parent=1 // pred_check
      _
    $region3: #{tpu_custom_call.1} parent=1 // pred_check_branch
      %9 = sbr.rel (0) target = $region5
    $region4: #{tpu_custom_call.1} parent=1 // pred_region
      %11 = vsyncadd [#allocation3], 0
      %s13 = sshll.u32 %s0, 4
      %s14 = int_to_ptr.hbm [resolvable:$true] %s13
      %s15 = sshll.u32 [#allocation2], 4
      %s16 = int_to_ptr.vmem [resolvable:$true] %s15
      %18 = dma.hbm_to_vmem [thread:$0]  %s14, 128, %s16, [#allocation3]
    $region5: #{tpu_custom_call.1} parent=1 // pred_fallthru
      _
    // Predicated region
    $region6: #{tpu_custom_call.1} parent=1 // pred_check
      _
    $region7: #{tpu_custom_call.1} parent=1 // pred_check_branch
      %20 = sbr.rel (0) target = $region9
    $region8: #{tpu_custom_call.1} parent=1 // pred_region
      %22 = dma.done [#allocation3], 128
    $region9: #{tpu_custom_call.1} parent=1 // pred_fallthru
      _
    %v23 = vld [vmem:[#allocation2] sm:$0xff]
    %24 = vrot.lane.b32.xlu0 %v23, 3
    %v25 = vpop.permute.xlu0 %24
    %26 = vst [vmem:[#allocation5] sm:$0xff] %v25
    // Predicated region
    $region10: #{tpu_custom_call.1} parent=1 // pred_check
      _
    $region11: #{tpu_custom_call.1} parent=1 // pred_check_branch
      %28 = sbr.rel (0) target = $region13
    $region12: #{tpu_custom_call.1} parent=1 // pred_region
      %30 = vsyncadd [#allocation4], 0
      %s32 = sshll.u32 [#allocation5], 4
      %s33 = int_to_ptr.vmem [resolvable:$true] %s32
      %s34 = sshll.u32 %s1, 4
      %s35 = int_to_ptr.hbm [resolvable:$true] %s34
      %37 = dma.vmem_to_hbm [thread:$0]  %s33, 128, %s35, [#allocation4]
    $region13: #{tpu_custom_call.1} parent=1 // pred_fallthru
      _
    // Predicated region
    $region14: #{tpu_custom_call.1} parent=1 // pred_check
      _
    $region15: #{tpu_custom_call.1} parent=1 // pred_check_branch
      %39 = sbr.rel (0) target = $region17
    $region16: #{tpu_custom_call.1} parent=1 // pred_region
      %41 = dma.done [#allocation4], 128
    $region17: #{tpu_custom_call.1} parent=1 // pred_fallthru
      _
    %42 = vsyncpa [#allocation3], 1
    %43 = vsyncpa [#allocation4], 1

</llo_original>
